<compile_context>
chip_gen: v7x
topology: tpu7x:2x2x1
jax: 0.10.0
libtpu: 0.0.40
codegen_flags: <defaults>
</compile_context>

<pallas_src>
import jax
import jax.numpy as jnp
from jax.experimental import pallas as pl
from jax.experimental.pallas import tpu as pltpu


def _round_up(n, m):
    return ((n + m - 1) // m) * m


def softmaxnet_kernel(x_ref, we_ref, be_ref, wd_ref, bd_ref,
                      recon_ref, z_ref, zsm_ref):
    x = x_ref[...]                                                   # (TB, D) f32

    # ---- encoder_disc: Linear(D -> K) ----
    logits = jnp.dot(x, we_ref[...],
                     preferred_element_type=jnp.float32) + be_ref[...]   # (TB, Kp)

    # ---- STOneHot forward: one-hot of argmax over the class axis ----
    # Computed from logits (softmax is monotone => identical argmax), which keeps
    # the decoder matmul off the EUP exp/reciprocal path.  torch.argmax returns
    # the FIRST maximal index; reproduce with an iota-min over max positions.
    Kp = logits.shape[1]
    m = jnp.max(logits, axis=1, keepdims=True)                       # (TB, 1)
    col = jax.lax.broadcasted_iota(jnp.int32, logits.shape, 1)
    first_max = jnp.min(jnp.where(logits == m, col, Kp),
                        axis=1, keepdims=True)                       # (TB, 1)
    z = (col == first_max).astype(jnp.float32)                       # (TB, Kp)

    # ---- decoder: Linear(K -> D) ----  (MXU; overlaps the EUP softmax below)
    recon = jnp.dot(z, wd_ref[...],
                    preferred_element_type=jnp.float32) + bd_ref[...]    # (TB, D)

    recon_ref[...] = recon
    z_ref[...] = z.astype(z_ref.dtype)          # one-hot: 0/1 exact in bf16

    # ---- softmax over the class axis (only the zsm output needs exp/div) ----
    e = jnp.exp(logits - m)
    denom = jnp.sum(e, axis=1, keepdims=True)
    zsm_ref[...] = (e * pl.reciprocal(denom, approx=False)).astype(zsm_ref.dtype)


def prepare_params(we, be, wd, bd):
    """One-time parameter preparation, hoisted out of the per-call forward path.

    Only the class axis K is lane-padded (to a multiple of 128) and only when
    needed; the feature axis D and the batch axis are never padded, so the
    forward pass never copies x or the weights."""
    we = jnp.asarray(we, jnp.float32)
    wd = jnp.asarray(wd, jnp.float32)
    be = jnp.asarray(be, jnp.float32).reshape(1, -1)
    bd = jnp.asarray(bd, jnp.float32).reshape(1, -1)
    D, K = we.shape
    Kp = _round_up(K, 128)
    if Kp != K:
        NEG = jnp.float32(-1e30)   # padded class columns can never win softmax/argmax
        we = jnp.zeros((D, Kp), jnp.float32).at[:, :K].set(we)
        be = jnp.full((1, Kp), NEG, jnp.float32).at[:, :K].set(be)
        wd = jnp.zeros((Kp, D), jnp.float32).at[:K, :].set(wd)
    return {"we": we, "be": be, "wd": wd, "bd": bd, "D": D, "K": K}


def softmax_net_forward(x, params, *, block_b=512, z_dtype=jnp.bfloat16):
    we, be, wd, bd = params["we"], params["be"], params["wd"], params["bd"]
    D, K = params["D"], params["K"]
    Kp = we.shape[1]
    B = x.shape[0]
    if x.dtype != jnp.float32:
        x = x.astype(jnp.float32)

    # ---- generation-aware VMEM budget ----
    try:
        vmem_cap = int(pltpu.get_tpu_info().vmem_capacity_bytes)
    except Exception:
        vmem_cap = 64 * 1024 * 1024          # conservative: v7x per-core VMEM

    z_item = jnp.dtype(z_dtype).itemsize
    weight_bytes = 4 * (D * Kp + Kp * D + Kp + D)      # single-buffered residents

    def tile_bytes(tb):
        # double-buffered streamed blocks + live in-kernel temporaries
        stream = 2 * (tb * D * 4 + tb * D * 4 + tb * Kp * z_item + tb * Kp * 4)
        temps = 6 * tb * Kp * 4 + 2 * tb * D * 4        # logits, iota, z, e, ...
        return stream + temps

    budget = int(0.70 * vmem_cap)

    # ---- batch tile: large for HBM bandwidth, >=2 grid steps (v7x megacore),
    #      shrink until the footprint fits the VMEM budget ----
    TB = min(_round_up(block_b, 8), _round_up(B, 8))
    TB = min(TB, max(8, _round_up(pl.cdiv(B, 2), 8)))
    while TB > 8 and weight_bytes + tile_bytes(TB) > budget:
        TB = max(8, _round_up(TB // 2, 8))

    # Partial final block: garbage input rows are harmless (rows independent);
    # out-of-bounds output rows are dropped.  No batch padding, no x copy.
    grid = (pl.cdiv(B, TB),)

    # Scoped VMEM limit: never below the 32 MiB v6e/v7x default (v5e default is
    # 16 MiB so 32 MiB only raises it), never above ~75% of physical VMEM.
    need = weight_bytes + tile_bytes(TB)
    vmem_limit = min(max(32 * 1024 * 1024, int(1.25 * need)),
                     int(0.75 * vmem_cap))

    out_shape = (
        jax.ShapeDtypeStruct((B, D), jnp.float32),   # decoder(z)
        jax.ShapeDtypeStruct((B, Kp), z_dtype),      # self.z  (one-hot)
        jax.ShapeDtypeStruct((B, Kp), jnp.float32),  # self.z_softmax
    )

    x_spec = pl.BlockSpec((TB, D), lambda i: (i, 0))
    recon_spec = pl.BlockSpec((TB, D), lambda i: (i, 0))
    zk_spec = pl.BlockSpec((TB, Kp), lambda i: (i, 0))

    def run(single_buffer_weights):
        kw = {"pipeline_mode": pl.Buffered(1)} if single_buffer_weights else {}
        # Constant index_map => weights/biases stay VMEM-resident across the grid.
        we_spec = pl.BlockSpec((D, Kp), lambda i: (0, 0), **kw)
        be_spec = pl.BlockSpec((1, Kp), lambda i: (0, 0), **kw)
        wd_spec = pl.BlockSpec((Kp, D), lambda i: (0, 0), **kw)
        bd_spec = pl.BlockSpec((1, D), lambda i: (0, 0), **kw)
        return pl.pallas_call(
            softmaxnet_kernel,
            grid=grid,
            out_shape=out_shape,
            in_specs=[x_spec, we_spec, be_spec, wd_spec, bd_spec],
            out_specs=(recon_spec, zk_spec, zk_spec),
            compiler_params=pltpu.CompilerParams(
                dimension_semantics=("parallel",),
                vmem_limit_bytes=vmem_limit,
            ),
        )(x, we, be, wd, bd)

    if hasattr(pl, "Buffered"):
        try:
            recon, z_p, zsm_p = run(True)
        except Exception:
            recon, z_p, zsm_p = run(False)   # pipeline_mode unsupported -> default buffering
    else:
        recon, z_p, zsm_p = run(False)

    if Kp != K:                              # strip class-axis lane padding (no-op if aligned)
        z_p = z_p[:, :K]
        zsm_p = zsm_p[:, :K]
    return recon, z_p, zsm_p


if __name__ == "__main__":
    B, D, K = 8, 32, 16   # batch, feature dim, number of discrete classes

    key = jax.random.PRNGKey(0)
    k_x, k_we, k_be, k_wd, k_bd = jax.random.split(key, 5)

    x = jax.random.normal(k_x, (B, D), dtype=jnp.float32)
    # Deterministic synthetic parameters (PyTorch Linear-like scaling).
    we = jax.random.normal(k_we, (D, K), dtype=jnp.float32) / jnp.sqrt(D)
    be = jax.random.normal(k_be, (1, K), dtype=jnp.float32) * 0.01
    wd = jax.random.normal(k_wd, (K, D), dtype=jnp.float32) / jnp.sqrt(K)
    bd = jax.random.normal(k_bd, (1, D), dtype=jnp.float32) * 0.01

    params = prepare_params(we, be, wd, bd)   # one-time padding, hoisted out of forward
    recon, z, z_softmax = softmax_net_forward(x, params)
    jax.block_until_ready((recon, z, z_softmax))

    # Pure-JAX reference check of the full forward pass.
    logits_ref = x @ we + be
    zsm_ref = jax.nn.softmax(logits_ref, axis=1)
    z_ref = jax.nn.one_hot(jnp.argmax(zsm_ref, axis=1), K, dtype=jnp.float32)
    recon_ref = z_ref @ wd + bd
    assert jnp.allclose(z_softmax, zsm_ref, atol=1e-5)
    assert jnp.allclose(z.astype(jnp.float32), z_ref)
    assert jnp.allclose(recon, recon_ref, atol=1e-5)

    print("KERNEL_OK")
</pallas_src>

<mosaic_0001>
module attributes {stable_mosaic.version = 11 : i64} {
  func.func @softmaxnet_kernel(%arg0: i32, %arg1: memref<8x32xf32, #tpu.memory_space<vmem>>, %arg2: memref<32x128xf32, #tpu.memory_space<vmem>>, %arg3: memref<1x128xf32, #tpu.memory_space<vmem>>, %arg4: memref<128x32xf32, #tpu.memory_space<vmem>>, %arg5: memref<1x32xf32, #tpu.memory_space<vmem>>, %arg6: memref<8x32xf32, #tpu.memory_space<vmem>>, %arg7: memref<8x128xbf16, #tpu.memory_space<vmem>>, %arg8: memref<8x128xf32, #tpu.memory_space<vmem>>) attributes {dimension_semantics = [#tpu.dimension_semantics<parallel>], iteration_bounds = array<i64: 1>, scalar_prefetch = 0 : i64, scratch_operands = 0 : i64, tpu.core_type = #tpu.core_type<tc>, window_params = [{transform_indices = @transform_0, window_bounds = array<i64: 8, 32>}, {pipeline_mode = #tpu.pipeline_mode<synchronous>, transform_indices = @transform_1, window_bounds = array<i64: 32, 128>}, {pipeline_mode = #tpu.pipeline_mode<synchronous>, transform_indices = @transform_2, window_bounds = array<i64: 1, 128>}, {pipeline_mode = #tpu.pipeline_mode<synchronous>, transform_indices = @transform_3, window_bounds = array<i64: 128, 32>}, {pipeline_mode = #tpu.pipeline_mode<synchronous>, transform_indices = @transform_4, window_bounds = array<i64: 1, 32>}, {transform_indices = @transform_5, window_bounds = array<i64: 8, 32>}, {transform_indices = @transform_6, window_bounds = array<i64: 8, 128>}, {transform_indices = @transform_7, window_bounds = array<i64: 8, 128>}]} {
    %c0 = arith.constant 0 : index
    %c0_0 = arith.constant 0 : index
    %0 = vector.load %arg1[%c0, %c0_0] : memref<8x32xf32, #tpu.memory_space<vmem>>, vector<8x32xf32>
    %c0_1 = arith.constant 0 : index
    %c0_2 = arith.constant 0 : index
    %1 = vector.load %arg2[%c0_1, %c0_2] : memref<32x128xf32, #tpu.memory_space<vmem>>, vector<32x128xf32>
    %cst = arith.constant dense<0.000000e+00> : vector<8x128xf32>
    %2 = tpu.matmul %0, %1, %cst {dimension_numbers = #tpu.dot_dimension_numbers<[1], [0], [0], [1], [0, 0, 1, 1], [], []>} : vector<8x32xf32>, vector<32x128xf32>, vector<8x128xf32> -> vector<8x128xf32>
    %c0_3 = arith.constant 0 : index
    %c0_4 = arith.constant 0 : index
    %3 = vector.load %arg3[%c0_3, %c0_4] : memref<1x128xf32, #tpu.memory_space<vmem>>, vector<1x128xf32>
    %4 = vector.broadcast %3 : vector<1x128xf32> to vector<8x128xf32>
    %5 = arith.addf %2, %4 : vector<8x128xf32>
    %cst_5 = arith.constant dense<0xFF800000> : vector<8xf32>
    %6 = vector.multi_reduction <maximumf>, %5, %cst_5 [1] : vector<8x128xf32> to vector<8xf32>
    %7 = vector.shape_cast %6 : vector<8xf32> to vector<8x1xf32>
    %8 = tpu.iota {dimensions = array<i32: 1>} : vector<8x128xi32>
    %9 = vector.broadcast %7 : vector<8x1xf32> to vector<8x128xf32>
    %10 = arith.cmpf oeq, %5, %9 : vector<8x128xf32>
    %c128_i32 = arith.constant 128 : i32
    %11 = vector.broadcast %c128_i32 : i32 to vector<8x128xi32>
    %12 = arith.select %10, %8, %11 : vector<8x128xi1>, vector<8x128xi32>
    %cst_6 = arith.constant dense<2147483647> : vector<8xi32>
    %13 = vector.multi_reduction <minsi>, %12, %cst_6 [1] : vector<8x128xi32> to vector<8xi32>
    %14 = vector.shape_cast %13 : vector<8xi32> to vector<8x1xi32>
    %15 = vector.broadcast %14 : vector<8x1xi32> to vector<8x128xi32>
    %16 = arith.cmpi eq, %8, %15 : vector<8x128xi32>
    %17 = arith.extui %16 : vector<8x128xi1> to vector<8x128xi32>
    %18 = arith.sitofp %17 : vector<8x128xi32> to vector<8x128xf32>
    %c0_7 = arith.constant 0 : index
    %c0_8 = arith.constant 0 : index
    %19 = vector.load %arg4[%c0_7, %c0_8] : memref<128x32xf32, #tpu.memory_space<vmem>>, vector<128x32xf32>
    %cst_9 = arith.constant dense<0.000000e+00> : vector<8x32xf32>
    %20 = tpu.matmul %18, %19, %cst_9 {dimension_numbers = #tpu.dot_dimension_numbers<[1], [0], [0], [1], [0, 0, 1, 1], [], []>} : vector<8x128xf32>, vector<128x32xf32>, vector<8x32xf32> -> vector<8x32xf32>
    %c0_10 = arith.constant 0 : index
    %c0_11 = arith.constant 0 : index
    %21 = vector.load %arg5[%c0_10, %c0_11] : memref<1x32xf32, #tpu.memory_space<vmem>>, vector<1x32xf32>
    %22 = vector.broadcast %21 : vector<1x32xf32> to vector<8x32xf32>
    %23 = arith.addf %20, %22 : vector<8x32xf32>
    %c0_12 = arith.constant 0 : index
    %c0_13 = arith.constant 0 : index
    %24 = vector.load %arg6[%c0_12, %c0_13] : memref<8x32xf32, #tpu.memory_space<vmem>>, vector<8x32xf32>
    tpu.vector_store %arg6[%c0_12, %c0_13], %23 {strides = array<i32>} : memref<8x32xf32, #tpu.memory_space<vmem>>, vector<8x32xf32>,
    %25 = arith.truncf %18 : vector<8x128xf32> to vector<8x128xbf16>
    %c0_14 = arith.constant 0 : index
    %c0_15 = arith.constant 0 : index
    %26 = vector.load %arg7[%c0_14, %c0_15] : memref<8x128xbf16, #tpu.memory_space<vmem>>, vector<8x128xbf16>
    tpu.vector_store %arg7[%c0_14, %c0_15], %25 {strides = array<i32>} : memref<8x128xbf16, #tpu.memory_space<vmem>>, vector<8x128xbf16>,
    %27 = vector.broadcast %7 : vector<8x1xf32> to vector<8x128xf32>
    %28 = arith.subf %5, %27 : vector<8x128xf32>
    %29 = math.exp %28 : vector<8x128xf32>
    %cst_16 = arith.constant dense<0.000000e+00> : vector<8xf32>
    %30 = vector.multi_reduction <add>, %29, %cst_16 [1] : vector<8x128xf32> to vector<8xf32>
    %31 = vector.shape_cast %30 : vector<8xf32> to vector<8x1xf32>
    %32 = tpu.reciprocal %31 : vector<8x1xf32> -> vector<8x1xf32>
    %33 = vector.broadcast %32 : vector<8x1xf32> to vector<8x128xf32>
    %34 = arith.mulf %29, %33 : vector<8x128xf32>
    %c0_17 = arith.constant 0 : index
    %c0_18 = arith.constant 0 : index
    %35 = vector.load %arg8[%c0_17, %c0_18] : memref<8x128xf32, #tpu.memory_space<vmem>>, vector<8x128xf32>
    tpu.vector_store %arg8[%c0_17, %c0_18], %34 {strides = array<i32>} : memref<8x128xf32, #tpu.memory_space<vmem>>, vector<8x128xf32>,
    return
  }
  func.func @transform_0(%arg0: i32) -> (i32, i32) {
    %c0_i32 = arith.constant 0 : i32
    %c0_i32_0 = arith.constant 0 : i32
    return %arg0, %c0_i32 : i32, i32
  }
  func.func @transform_1(%arg0: i32) -> (i32, i32) {
    %c0_i32 = arith.constant 0 : i32
    %c0_i32_0 = arith.constant 0 : i32
    %c0_i32_1 = arith.constant 0 : i32
    return %c0_i32, %c0_i32_0 : i32, i32
  }
  func.func @transform_2(%arg0: i32) -> (i32, i32) {
    %c0_i32 = arith.constant 0 : i32
    %c0_i32_0 = arith.constant 0 : i32
    %c0_i32_1 = arith.constant 0 : i32
    return %c0_i32, %c0_i32_0 : i32, i32
  }
  func.func @transform_3(%arg0: i32) -> (i32, i32) {
    %c0_i32 = arith.constant 0 : i32
    %c0_i32_0 = arith.constant 0 : i32
    %c0_i32_1 = arith.constant 0 : i32
    return %c0_i32, %c0_i32_0 : i32, i32
  }
  func.func @transform_4(%arg0: i32) -> (i32, i32) {
    %c0_i32 = arith.constant 0 : i32
    %c0_i32_0 = arith.constant 0 : i32
    %c0_i32_1 = arith.constant 0 : i32
    return %c0_i32, %c0_i32_0 : i32, i32
  }
  func.func @transform_5(%arg0: i32) -> (i32, i32) {
    %c0_i32 = arith.constant 0 : i32
    %c0_i32_0 = arith.constant 0 : i32
    return %arg0, %c0_i32 : i32, i32
  }
  func.func @transform_6(%arg0: i32) -> (i32, i32) {
    %c0_i32 = arith.constant 0 : i32
    %c0_i32_0 = arith.constant 0 : i32
    return %arg0, %c0_i32 : i32, i32
  }
  func.func @transform_7(%arg0: i32) -> (i32, i32) {
    %c0_i32 = arith.constant 0 : i32
    %c0_i32_0 = arith.constant 0 : i32
    return %arg0, %c0_i32 : i32, i32
  }
}

module attributes {stable_mosaic.version = 11 : i64} {
  func.func @softmaxnet_kernel(%arg0: i32, %arg1: memref<8x32xf32, #tpu.memory_space<vmem>>, %arg2: memref<32x128xf32, #tpu.memory_space<vmem>>, %arg3: memref<1x128xf32, #tpu.memory_space<vmem>>, %arg4: memref<128x32xf32, #tpu.memory_space<vmem>>, %arg5: memref<1x32xf32, #tpu.memory_space<vmem>>, %arg6: memref<8x32xf32, #tpu.memory_space<vmem>>, %arg7: memref<8x128xbf16, #tpu.memory_space<vmem>>, %arg8: memref<8x128xf32, #tpu.memory_space<vmem>>) attributes {dimension_semantics = [#tpu.dimension_semantics<parallel>], iteration_bounds = array<i64: 1>, scalar_prefetch = 0 : i64, scratch_operands = 0 : i64, tpu.core_type = #tpu.core_type<tc>, window_params = [{transform_indices = @transform_0, window_bounds = array<i64: 8, 32>}, {pipeline_mode = #tpu.pipeline_mode<synchronous>, transform_indices = @transform_1, window_bounds = array<i64: 32, 128>}, {pipeline_mode = #tpu.pipeline_mode<synchronous>, transform_indices = @transform_2, window_bounds = array<i64: 1, 128>}, {pipeline_mode = #tpu.pipeline_mode<synchronous>, transform_indices = @transform_3, window_bounds = array<i64: 128, 32>}, {pipeline_mode = #tpu.pipeline_mode<synchronous>, transform_indices = @transform_4, window_bounds = array<i64: 1, 32>}, {transform_indices = @transform_5, window_bounds = array<i64: 8, 32>}, {transform_indices = @transform_6, window_bounds = array<i64: 8, 128>}, {transform_indices = @transform_7, window_bounds = array<i64: 8, 128>}]} {
    %c0 = arith.constant 0 : index
    %c0_0 = arith.constant 0 : index
    %0 = vector.load %arg1[%c0, %c0_0] : memref<8x32xf32, #tpu.memory_space<vmem>>, vector<8x32xf32>
    %c0_1 = arith.constant 0 : index
    %c0_2 = arith.constant 0 : index
    %1 = vector.load %arg2[%c0_1, %c0_2] : memref<32x128xf32, #tpu.memory_space<vmem>>, vector<32x128xf32>
    %cst = arith.constant dense<0.000000e+00> : vector<8x128xf32>
    %2 = tpu.matmul %0, %1, %cst {dimension_numbers = #tpu.dot_dimension_numbers<[1], [0], [0], [1], [0, 0, 1, 1], [], []>} : vector<8x32xf32>, vector<32x128xf32>, vector<8x128xf32> -> vector<8x128xf32>
    %c0_3 = arith.constant 0 : index
    %c0_4 = arith.constant 0 : index
    %3 = vector.load %arg3[%c0_3, %c0_4] : memref<1x128xf32, #tpu.memory_space<vmem>>, vector<1x128xf32>
    %4 = vector.broadcast %3 : vector<1x128xf32> to vector<8x128xf32>
    %5 = arith.addf %2, %4 : vector<8x128xf32>
    %cst_5 = arith.constant dense<0xFF800000> : vector<8xf32>
    %6 = vector.multi_reduction <maximumf>, %5, %cst_5 [1] : vector<8x128xf32> to vector<8xf32>
    %7 = vector.shape_cast %6 : vector<8xf32> to vector<8x1xf32>
    %8 = tpu.iota {dimensions = array<i32: 1>} : vector<8x128xi32>
    %9 = vector.broadcast %7 : vector<8x1xf32> to vector<8x128xf32>
    %10 = arith.cmpf oeq, %5, %9 : vector<8x128xf32>
    %c128_i32 = arith.constant 128 : i32
    %11 = vector.broadcast %c128_i32 : i32 to vector<8x128xi32>
    %12 = arith.select %10, %8, %11 : vector<8x128xi1>, vector<8x128xi32>
    %cst_6 = arith.constant dense<2147483647> : vector<8xi32>
    %13 = vector.multi_reduction <minsi>, %12, %cst_6 [1] : vector<8x128xi32> to vector<8xi32>
    %14 = vector.shape_cast %13 : vector<8xi32> to vector<8x1xi32>
    %15 = vector.broadcast %14 : vector<8x1xi32> to vector<8x128xi32>
    %16 = arith.cmpi eq, %8, %15 : vector<8x128xi32>
    %17 = arith.extui %16 : vector<8x128xi1> to vector<8x128xi32>
    %18 = arith.sitofp %17 : vector<8x128xi32> to vector<8x128xf32>
    %c0_7 = arith.constant 0 : index
    %c0_8 = arith.constant 0 : index
    %19 = vector.load %arg4[%c0_7, %c0_8] : memref<128x32xf32, #tpu.memory_space<vmem>>, vector<128x32xf32>
    %cst_9 = arith.constant dense<0.000000e+00> : vector<8x32xf32>
    %20 = tpu.matmul %18, %19, %cst_9 {dimension_numbers = #tpu.dot_dimension_numbers<[1], [0], [0], [1], [0, 0, 1, 1], [], []>} : vector<8x128xf32>, vector<128x32xf32>, vector<8x32xf32> -> vector<8x32xf32>
    %c0_10 = arith.constant 0 : index
    %c0_11 = arith.constant 0 : index
    %21 = vector.load %arg5[%c0_10, %c0_11] : memref<1x32xf32, #tpu.memory_space<vmem>>, vector<1x32xf32>
    %22 = vector.broadcast %21 : vector<1x32xf32> to vector<8x32xf32>
    %23 = arith.addf %20, %22 : vector<8x32xf32>
    %c0_12 = arith.constant 0 : index
    %c0_13 = arith.constant 0 : index
    %24 = vector.load %arg6[%c0_12, %c0_13] : memref<8x32xf32, #tpu.memory_space<vmem>>, vector<8x32xf32>
    tpu.vector_store %arg6[%c0_12, %c0_13], %23 {strides = array<i32>} : memref<8x32xf32, #tpu.memory_space<vmem>>, vector<8x32xf32>,
    %25 = arith.truncf %18 : vector<8x128xf32> to vector<8x128xbf16>
    %c0_14 = arith.constant 0 : index
    %c0_15 = arith.constant 0 : index
    %26 = vector.load %arg7[%c0_14, %c0_15] : memref<8x128xbf16, #tpu.memory_space<vmem>>, vector<8x128xbf16>
    tpu.vector_store %arg7[%c0_14, %c0_15], %25 {strides = array<i32>} : memref<8x128xbf16, #tpu.memory_space<vmem>>, vector<8x128xbf16>,
    %27 = vector.broadcast %7 : vector<8x1xf32> to vector<8x128xf32>
    %28 = arith.subf %5, %27 : vector<8x128xf32>
    %29 = math.exp %28 : vector<8x128xf32>
    %cst_16 = arith.constant dense<0.000000e+00> : vector<8xf32>
    %30 = vector.multi_reduction <add>, %29, %cst_16 [1] : vector<8x128xf32> to vector<8xf32>
    %31 = vector.shape_cast %30 : vector<8xf32> to vector<8x1xf32>
    %32 = tpu.reciprocal %31 : vector<8x1xf32> -> vector<8x1xf32>
    %33 = vector.broadcast %32 : vector<8x1xf32> to vector<8x128xf32>
    %34 = arith.mulf %29, %33 : vector<8x128xf32>
    %c0_17 = arith.constant 0 : index
    %c0_18 = arith.constant 0 : index
    %35 = vector.load %arg8[%c0_17, %c0_18] : memref<8x128xf32, #tpu.memory_space<vmem>>, vector<8x128xf32>
    tpu.vector_store %arg8[%c0_17, %c0_18], %34 {strides = array<i32>} : memref<8x128xf32, #tpu.memory_space<vmem>>, vector<8x128xf32>,
    return
  }
  func.func @transform_0(%arg0: i32) -> (i32, i32) {
    %c0_i32 = arith.constant 0 : i32
    %c0_i32_0 = arith.constant 0 : i32
    return %arg0, %c0_i32 : i32, i32
  }
  func.func @transform_1(%arg0: i32) -> (i32, i32) {
    %c0_i32 = arith.constant 0 : i32
    %c0_i32_0 = arith.constant 0 : i32
    %c0_i32_1 = arith.constant 0 : i32
    return %c0_i32, %c0_i32_0 : i32, i32
  }
  func.func @transform_2(%arg0: i32) -> (i32, i32) {
    %c0_i32 = arith.constant 0 : i32
    %c0_i32_0 = arith.constant 0 : i32
    %c0_i32_1 = arith.constant 0 : i32
    return %c0_i32, %c0_i32_0 : i32, i32
  }
  func.func @transform_3(%arg0: i32) -> (i32, i32) {
    %c0_i32 = arith.constant 0 : i32
    %c0_i32_0 = arith.constant 0 : i32
    %c0_i32_1 = arith.constant 0 : i32
    return %c0_i32, %c0_i32_0 : i32, i32
  }
  func.func @transform_4(%arg0: i32) -> (i32, i32) {
    %c0_i32 = arith.constant 0 : i32
    %c0_i32_0 = arith.constant 0 : i32
    %c0_i32_1 = arith.constant 0 : i32
    return %c0_i32, %c0_i32_0 : i32, i32
  }
  func.func @transform_5(%arg0: i32) -> (i32, i32) {
    %c0_i32 = arith.constant 0 : i32
    %c0_i32_0 = arith.constant 0 : i32
    return %arg0, %c0_i32 : i32, i32
  }
  func.func @transform_6(%arg0: i32) -> (i32, i32) {
    %c0_i32 = arith.constant 0 : i32
    %c0_i32_0 = arith.constant 0 : i32
    return %arg0, %c0_i32 : i32, i32
  }
  func.func @transform_7(%arg0: i32) -> (i32, i32) {
    %c0_i32 = arith.constant 0 : i32
    %c0_i32_0 = arith.constant 0 : i32
    return %arg0, %c0_i32 : i32, i32
  }
}

</mosaic_0001>

<llo_original>
// kernel: tpu_custom_call.1
$region0: #{tpu_custom_call.1}
  #allocation0 [shape = 'u32[]', space=smem, size = 0x4, offset = 0x4, fixed_abs, tag = 'smem constant byte address 0x4 - core index']
  #allocation1 [shape = 'u32[144,128]{1,0:T(1,128)}', space=vmem, size = 0x12000, scoped, tag = 'internal scratch']
  %s0 = inlined_call_operand.vmem [shape: f32[8,32], index: 0, kind: input, shape index: {}]
  %s1 = inlined_call_operand.vmem [shape: f32[32,128], index: 1, kind: input, shape index: {}]
  %s2 = inlined_call_operand.vmem [shape: f32[1,128], index: 2, kind: input, shape index: {}]
  %s3 = inlined_call_operand.vmem [shape: f32[128,32], index: 3, kind: input, shape index: {}]
  %s4 = inlined_call_operand.vmem [shape: f32[1,32], index: 4, kind: input, shape index: {}]
  %s5 = inlined_call_operand.hbm [shape: f32[8,32], index: 5, kind: output, shape index: {0}]
  %s6 = inlined_call_operand.hbm [shape: bf16[8,128], index: 6, kind: output, shape index: {1}]
  %s7 = inlined_call_operand.hbm [shape: f32[8,128], index: 7, kind: output, shape index: {2}]
  %8 = xla_tuple %s5, %s6, %s7
  %s9 = sld [smem:[#allocation0]]
  $region46: #{tpu_custom_call.1} parent=0
    _
  %s11 = ssub.s32 1, %s9
  %s12 = scalar_select 0, %s11, %s9
  $region1: #{tpu_custom_call.1} parent=0
    #allocation2 [shape = 'u8[4096]{0}', space=vmem, size = 0x1000, scoped, tag = 'output window, operand 0, single buffered']
    #allocation3 [shape = 's32[1]{0}', space=sflag, size = 0x4, scoped, tag = 'scoped memory for tpu_custom_call.1']
    #allocation4 [shape = 'u8[2048]{0}', space=vmem, size = 0x800, scoped, tag = 'output window, operand 1, single buffered']
    #allocation5 [shape = 's32[1]{0}', space=sflag, size = 0x4, scoped, tag = 'scoped memory for tpu_custom_call.1']
    #allocation6 [shape = 'u8[4096]{0}', space=vmem, size = 0x1000, scoped, tag = 'output window, operand 2, single buffered']
    %13 = vsyncpa [#allocation3], 0
    %14 = vsyncpa [#allocation5], 0
    // Predicated region
    $region2: #{tpu_custom_call.1} parent=1 // pred_check
      _
    $region3: #{tpu_custom_call.1} parent=1 // pred_check_branch
      %16 = sbr.rel (0) target = $region5
    $region4: #{tpu_custom_call.1} parent=1 // pred_region
      _
    $region5: #{tpu_custom_call.1} parent=1 // pred_fallthru
      _
    // Predicated region
    $region6: #{tpu_custom_call.1} parent=1 // pred_check
      _
    $region7: #{tpu_custom_call.1} parent=1 // pred_check_branch
      %18 = sbr.rel (0) target = $region9
    $region8: #{tpu_custom_call.1} parent=1 // pred_region
      _
    $region9: #{tpu_custom_call.1} parent=1 // pred_fallthru
      _
    // Predicated region
    $region10: #{tpu_custom_call.1} parent=1 // pred_check
      _
    $region11: #{tpu_custom_call.1} parent=1 // pred_check_branch
      %20 = sbr.rel (0) target = $region13
    $region12: #{tpu_custom_call.1} parent=1 // pred_region
      _
    $region13: #{tpu_custom_call.1} parent=1 // pred_fallthru
      _
    // Predicated region
    $region14: #{tpu_custom_call.1} parent=1 // pred_check
      _
    $region15: #{tpu_custom_call.1} parent=1 // pred_check_branch
      %22 = sbr.rel (0) target = $region17
    $region16: #{tpu_custom_call.1} parent=1 // pred_region
      _
    $region17: #{tpu_custom_call.1} parent=1 // pred_fallthru
      _
    // Predicated region
    $region18: #{tpu_custom_call.1} parent=1 // pred_check
      _
    $region19: #{tpu_custom_call.1} parent=1 // pred_check_branch
      %24 = sbr.rel (0) target = $region21
    $region20: #{tpu_custom_call.1} parent=1 // pred_region
      _
    $region21: #{tpu_custom_call.1} parent=1 // pred_fallthru
      _
    %v25 = vld [vmem:[%s0] sm:$0xff]
    %v26 = vld [vmem:[%s1] sm:$0xff]
    %v27 = vld [vmem:[%s1 + $0x8] sm:$0xff]
    %v28 = vld [vmem:[%s1 + $0x10] sm:$0xff]
    %v29 = vld [vmem:[%s1 + $0x18] sm:$0xff]
    %v30 = vld [vmem:[%s2] sm:$0x1]
    %v32 = vlaneseq
    %v33 = vshrl.u32 %v32, 7
    %v34 = vsub.s32 0, %v33
    %v35 = vrot.slane %v30, %v34
    %vm37 = vcmask 261120
    %v39 = vsel %vm37, %v25, 0
    %41 = vmatprep.subr.mxu0 0.0
    %42 = vmatpush1.msra.mxu0 %v26
    %43 = vmatprep.subr.mxu0 0.0
    %44 = vmatpush1.msra.mxu0 %v27
    %45 = vmatprep.subr.mxu0 0.0
    %46 = vmatpush1.msra.mxu0 %v28
    %47 = vmatprep.subr.mxu0 0.0
    %48 = vmatpush1.msra.mxu0 %v29
    %49 = vmatprep.subr.mxu0 0.0
    %50 = vmatpush1.msra.mxu0 0.0
    %51 = vmatprep.subr.mxu0 0.0
    %52 = vmatpush1.msra.mxu0 0.0
    %53 = vmatprep.subr.mxu0 0.0
    %54 = vmatpush1.msra.mxu0 0.0
    %55 = vmatprep.subr.mxu0 0.0
    %56 = vmatpush1.msra.mxu0 0.0
    %57 = vmatprep.subr.mxu0 0.0
    %58 = vmatpush1.msra.mxu0 0.0
    %59 = vmatprep.subr.mxu0 0.0
    %60 = vmatpush1.msra.mxu0 0.0
    %61 = vmatprep.subr.mxu0 0.0
    %62 = vmatpush1.msra.mxu0 0.0
    %63 = vmatprep.subr.mxu0 0.0
    %64 = vmatpush1.msra.mxu0 0.0
    %65 = vmatprep.subr.mxu0 0.0
    %66 = vmatpush1.msra.mxu0 0.0
    %67 = vmatprep.subr.mxu0 0.0
    %68 = vmatpush1.msra.mxu0 0.0
    %69 = vmatprep.subr.mxu0 0.0
    %70 = vmatpush1.msra.mxu0 0.0
    %71 = vmatprep.subr.mxu0 0.0
    %72 = vmatpush1.msra.mxu0 0.0
    %73 = vmatprep.subr.mxu0 0.0
    %74 = vmatpush1.msra.mxu0 0.0
    %75 = vmatprep.subr.mxu0 0.0
    %76 = vmatpush1.msra.mxu0 0.0
    %77 = vmatprep.subr.mxu0 0.0
    %78 = vmatpush1.msra.mxu0 0.0
    %79 = vmatprep.subr.mxu0 0.0
    %80 = vmatpush1.msra.mxu0 0.0
    %81 = vmatprep.subr.mxu0 0.0
    %82 = vmatpush1.msra.mxu0 0.0
    %83 = vmatprep.subr.mxu0 0.0
    %84 = vmatpush1.msra.mxu0 0.0
    %85 = vmatprep.subr.mxu0 0.0
    %86 = vmatpush1.msra.mxu0 0.0
    %87 = vmatprep.subr.mxu0 0.0
    %88 = vmatpush1.msra.mxu0 0.0
    %89 = vmatprep.subr.mxu0 0.0
    %90 = vmatpush1.msra.mxu0 0.0
    %91 = vmatprep.subr.mxu0 0.0
    %92 = vmatpush1.msra.mxu0 0.0
    %93 = vmatprep.subr.mxu0 0.0
    %94 = vmatpush1.msra.mxu0 0.0
    %95 = vmatprep.subr.mxu0 0.0
    %96 = vmatpush1.msra.mxu0 0.0
    %97 = vmatprep.subr.mxu0 0.0
    %98 = vmatpush1.msra.mxu0 0.0
    %99 = vmatprep.subr.mxu0 0.0
    %100 = vmatpush1.msra.mxu0 0.0
    %101 = vmatprep.subr.mxu0 0.0
    %102 = vmatpush1.msra.mxu0 0.0
    %103 = vmatprep.subr.mxu0 0.0
    %104 = vmatpush1.msra.mxu0 0.0
    %105 = vmatprep.mubr.f32.mxu0 0.0
    %106 = vmatmul.mubr.f32.gmra.mrb[0].mxu0 %v39
    %v107 = vpop.f32.mrb[0].mxu0
    %v108 = vadd.f32 %v35, %v107
    %v109 = vpop.f32.mrb[0].mxu0
    %110 = vdwg.mxu0
    %111 = vmax.xlane.f32.xlu0 %v108
    %v112 = vpop.xlane.xlu0 %111
    %v113 = vlaneseq
    %v114 = vand.u32 %v113, 127
    %vm115 = vcmp.eq.f32.partialorder %v108, %v112
    %v116 = vsel %vm115, %v114, 128
    %v117 = vand.u32 %v116, 65535
    %v118 = vshra.s32 %v116, 16
    %v119 = vcvt.s32.f32 %v117
    %v120 = vcvt.s32.f32 %v118
    %121 = vmin.xlane.f32.xlu0 %v120
    %v122 = vpop.xlane.xlu0 %121
    %vm123 = vcmp.eq.f32.partialorder %v120, %v122
    %v124 = vsel %vm123, %v119, inf
    %125 = vmin.xlane.f32.xlu0 %v124
    %v126 = vpop.xlane.xlu0 %125
    %v127 = vcvt.f32.s32 %v126
    %v128 = vcvt.f32.s32 %v122
    %v129 = vshll.u32 %v128, 16
    %v130 = vadd.s32 %v129, %v127
    %vm131 = vcmp.eq.s32.totalorder %v114, %v130
    %v132 = vsel %vm131, 1, 0
    %v133 = vcvt.s32.f32 %v132
    %v134 = vld [vmem:[%s3] sm:$0xff]
    %v135 = vld [vmem:[%s3 + $0x8] sm:$0xff]
    %v136 = vld [vmem:[%s3 + $0x10] sm:$0xff]
    %v137 = vld [vmem:[%s3 + $0x18] sm:$0xff]
    %v138 = vld [vmem:[%s3 + $0x20] sm:$0xff]
    %v139 = vld [vmem:[%s3 + $0x28] sm:$0xff]
    %v140 = vld [vmem:[%s3 + $0x30] sm:$0xff]
    %v141 = vld [vmem:[%s3 + $0x38] sm:$0xff]
    %v142 = vld [vmem:[%s3 + $0x40] sm:$0xff]
    %v143 = vld [vmem:[%s3 + $0x48] sm:$0xff]
    %v144 = vld [vmem:[%s3 + $0x50] sm:$0xff]
    %v145 = vld [vmem:[%s3 + $0x58] sm:$0xff]
    %v146 = vld [vmem:[%s3 + $0x60] sm:$0xff]
    %v147 = vld [vmem:[%s3 + $0x68] sm:$0xff]
    %v148 = vld [vmem:[%s3 + $0x70] sm:$0xff]
    %v149 = vld [vmem:[%s3 + $0x78] sm:$0xff]
    %v150 = vld [vmem:[%s4] sm:$0x1]
    %v152 = vlaneseq
    %v153 = vshrl.u32 %v152, 7
    %v154 = vsub.s32 0, %v153
    %v155 = vrot.slane %v150, %v154
    %157 = vmatprep.subr.mxu0 0.0
    %158 = vmatpush1.msra.mxu0 %v134
    %159 = vmatprep.subr.mxu0 0.0
    %160 = vmatpush1.msra.mxu0 %v135
    %161 = vmatprep.subr.mxu0 0.0
    %162 = vmatpush1.msra.mxu0 %v136
    %163 = vmatprep.subr.mxu0 0.0
    %164 = vmatpush1.msra.mxu0 %v137
    %165 = vmatprep.subr.mxu0 0.0
    %166 = vmatpush1.msra.mxu0 %v138
    %167 = vmatprep.subr.mxu0 0.0
    %168 = vmatpush1.msra.mxu0 %v139
    %169 = vmatprep.subr.mxu0 0.0
    %170 = vmatpush1.msra.mxu0 %v140
    %171 = vmatprep.subr.mxu0 0.0
    %172 = vmatpush1.msra.mxu0 %v141
    %173 = vmatprep.subr.mxu0 0.0
    %174 = vmatpush1.msra.mxu0 %v142
    %175 = vmatprep.subr.mxu0 0.0
    %176 = vmatpush1.msra.mxu0 %v143
    %177 = vmatprep.subr.mxu0 0.0
    %178 = vmatpush1.msra.mxu0 %v144
    %179 = vmatprep.subr.mxu0 0.0
    %180 = vmatpush1.msra.mxu0 %v145
    %181 = vmatprep.subr.mxu0 0.0
    %182 = vmatpush1.msra.mxu0 %v146
    %183 = vmatprep.subr.mxu0 0.0
    %184 = vmatpush1.msra.mxu0 %v147
    %185 = vmatprep.subr.mxu0 0.0
    %186 = vmatpush1.msra.mxu0 %v148
    %187 = vmatprep.subr.mxu0 0.0
    %188 = vmatpush1.msra.mxu0 %v149
    %189 = vmatprep.subr.mxu0 0.0
    %190 = vmatpush1.msra.mxu0 0.0
    %191 = vmatprep.subr.mxu0 0.0
    %192 = vmatpush1.msra.mxu0 0.0
    %193 = vmatprep.subr.mxu0 0.0
    %194 = vmatpush1.msra.mxu0 0.0
    %195 = vmatprep.subr.mxu0 0.0
    %196 = vmatpush1.msra.mxu0 0.0
    %197 = vmatprep.subr.mxu0 0.0
    %198 = vmatpush1.msra.mxu0 0.0
    %199 = vmatprep.subr.mxu0 0.0
    %200 = vmatpush1.msra.mxu0 0.0
    %201 = vmatprep.subr.mxu0 0.0
    %202 = vmatpush1.msra.mxu0 0.0
    %203 = vmatprep.subr.mxu0 0.0
    %204 = vmatpush1.msra.mxu0 0.0
    %205 = vmatprep.subr.mxu0 0.0
    %206 = vmatpush1.msra.mxu0 0.0
    %207 = vmatprep.subr.mxu0 0.0
    %208 = vmatpush1.msra.mxu0 0.0
    %209 = vmatprep.subr.mxu0 0.0
    %210 = vmatpush1.msra.mxu0 0.0
    %211 = vmatprep.subr.mxu0 0.0
    %212 = vmatpush1.msra.mxu0 0.0
    %213 = vmatprep.subr.mxu0 0.0
    %214 = vmatpush1.msra.mxu0 0.0
    %215 = vmatprep.subr.mxu0 0.0
    %216 = vmatpush1.msra.mxu0 0.0
    %217 = vmatprep.subr.mxu0 0.0
    %218 = vmatpush1.msra.mxu0 0.0
    %219 = vmatprep.subr.mxu0 0.0
    %220 = vmatpush1.msra.mxu0 0.0
    %221 = vmatprep.mubr.f32.mxu0 0.0
    %222 = vmatmul.mubr.f32.gmra.mrb[0].mxu0 %v133
    %v223 = vpop.f32.mrb[0].mxu0
    %v224 = vadd.f32 %v155, %v223
    %v225 = vpop.f32.mrb[0].mxu0
    %226 = vdwg.mxu0
    %227 = vst.msk [vmem:[#allocation2] sm:$0xff] %vm37, %v224
    %v228 = vpack.c.bf16 %v133, %v133
    %229 = vst [vmem:[#allocation4] sm:$0xf] %v228
    %v230 = vsub.f32 %v108, %v112
    %v231 = vmul.f32 %v230, 1.442695
    %v232 = vpow.pop %v231
    %233 = vadd.xlane.f32.xlu0 %v232
    %v234 = vpop.xlane.xlu0 %233
    %v235 = vrcp.pop %v234
    %v236 = vmul.f32 %v232, %v235
    %237 = vst [vmem:[#allocation6] sm:$0xff] %v236
    // Predicated region
    $region22: #{tpu_custom_call.1} parent=1 // pred_check
      _
    $region23: #{tpu_custom_call.1} parent=1 // pred_check_branch
      %239 = sbr.rel (0) target = $region25
    $region24: #{tpu_custom_call.1} parent=1 // pred_region
      %s241 = ssub.s32 128, 128
      %242 = vsyncadd [#allocation3], %s241
      %s244 = sshll.u32 [#allocation2], 4
      %s245 = int_to_ptr.vmem [resolvable:$true] %s244
      %247 = dma.vmem_to_hbm [thread:$0]  %s245, 128, %s5, [#allocation3]
    $region25: #{tpu_custom_call.1} parent=1 // pred_fallthru
      _
    // Predicated region
    $region26: #{tpu_custom_call.1} parent=1 // pred_check
      _
    $region27: #{tpu_custom_call.1} parent=1 // pred_check_branch
      %249 = sbr.rel (0) target = $region29
    $region28: #{tpu_custom_call.1} parent=1 // pred_region
      %s251 = ssub.s32 64, 64
      %252 = vsyncadd [#allocation5], %s251
      %s254 = sshll.u32 [#allocation4], 4
      %s255 = int_to_ptr.vmem [resolvable:$true] %s254
      %257 = dma.vmem_to_hbm [thread:$0]  %s255, 64, %s6, [#allocation5]
    $region29: #{tpu_custom_call.1} parent=1 // pred_fallthru
      _
    // Predicated region
    $region30: #{tpu_custom_call.1} parent=1 // pred_check
      _
    $region31: #{tpu_custom_call.1} parent=1 // pred_check_branch
      %259 = sbr.rel (0) target = $region33
    $region32: #{tpu_custom_call.1} parent=1 // pred_region
      %s261 = ssub.s32 128, 128
      %262 = vsyncadd [#allocation5], %s261
      %s264 = sshll.u32 [#allocation6], 4
      %s265 = int_to_ptr.vmem [resolvable:$true] %s264
      %267 = dma.vmem_to_hbm [thread:$0]  %s265, 128, %s7, [#allocation5]
    $region33: #{tpu_custom_call.1} parent=1 // pred_fallthru
      _
    // Predicated region
    $region34: #{tpu_custom_call.1} parent=1 // pred_check
      _
    $region35: #{tpu_custom_call.1} parent=1 // pred_check_branch
      %269 = sbr.rel (0) target = $region37
    $region36: #{tpu_custom_call.1} parent=1 // pred_region
      %270 = dma.done [#allocation3], 128
    $region37: #{tpu_custom_call.1} parent=1 // pred_fallthru
      _
    // Predicated region
    $region38: #{tpu_custom_call.1} parent=1 // pred_check
      _
    $region39: #{tpu_custom_call.1} parent=1 // pred_check_branch
      %272 = sbr.rel (0) target = $region41
    $region40: #{tpu_custom_call.1} parent=1 // pred_region
      %273 = dma.done [#allocation5], 64
    $region41: #{tpu_custom_call.1} parent=1 // pred_fallthru
      _
    // Predicated region
    $region42: #{tpu_custom_call.1} parent=1 // pred_check
      _
    $region43: #{tpu_custom_call.1} parent=1 // pred_check_branch
      %275 = sbr.rel (0) target = $region45
    $region44: #{tpu_custom_call.1} parent=1 // pred_region
      %276 = dma.done [#allocation5], 128
    $region45: #{tpu_custom_call.1} parent=1 // pred_fallthru
      _
    %277 = vsyncpa [#allocation3], 1
    %278 = vsyncpa [#allocation5], 1

// kernel: tpu_custom_call.1
$region0: #{tpu_custom_call.1}
  #allocation0 [shape = 'u32[]', space=smem, size = 0x4, offset = 0x4, fixed_abs, tag = 'smem constant byte address 0x4 - core index']
  #allocation1 [shape = 'u32[144,128]{1,0:T(1,128)}', space=vmem, size = 0x12000, scoped, tag = 'internal scratch']
  %s0 = inlined_call_operand.vmem [shape: f32[8,32], index: 0, kind: input, shape index: {}]
  %s1 = inlined_call_operand.vmem [shape: f32[32,128], index: 1, kind: input, shape index: {}]
  %s2 = inlined_call_operand.vmem [shape: f32[1,128], index: 2, kind: input, shape index: {}]
  %s3 = inlined_call_operand.vmem [shape: f32[128,32], index: 3, kind: input, shape index: {}]
  %s4 = inlined_call_operand.vmem [shape: f32[1,32], index: 4, kind: input, shape index: {}]
  %s5 = inlined_call_operand.hbm [shape: f32[8,32], index: 5, kind: output, shape index: {0}]
  %s6 = inlined_call_operand.hbm [shape: bf16[8,128], index: 6, kind: output, shape index: {1}]
  %s7 = inlined_call_operand.hbm [shape: f32[8,128], index: 7, kind: output, shape index: {2}]
  %8 = xla_tuple %s5, %s6, %s7
  %s9 = sld [smem:[#allocation0]]
  $region46: #{tpu_custom_call.1} parent=0
    _
  %s11 = ssub.s32 1, %s9
  %s12 = scalar_select 0, %s11, %s9
  $region1: #{tpu_custom_call.1} parent=0
    #allocation2 [shape = 'u8[4096]{0}', space=vmem, size = 0x1000, scoped, tag = 'output window, operand 0, single buffered']
    #allocation3 [shape = 's32[1]{0}', space=sflag, size = 0x4, scoped, tag = 'scoped memory for tpu_custom_call.1']
    #allocation4 [shape = 'u8[2048]{0}', space=vmem, size = 0x800, scoped, tag = 'output window, operand 1, single buffered']
    #allocation5 [shape = 's32[1]{0}', space=sflag, size = 0x4, scoped, tag = 'scoped memory for tpu_custom_call.1']
    #allocation6 [shape = 'u8[4096]{0}', space=vmem, size = 0x1000, scoped, tag = 'output window, operand 2, single buffered']
    %13 = vsyncpa [#allocation3], 0
    %14 = vsyncpa [#allocation5], 0
    // Predicated region
    $region2: #{tpu_custom_call.1} parent=1 // pred_check
      _
    $region3: #{tpu_custom_call.1} parent=1 // pred_check_branch
      %16 = sbr.rel (0) target = $region5
    $region4: #{tpu_custom_call.1} parent=1 // pred_region
      _
    $region5: #{tpu_custom_call.1} parent=1 // pred_fallthru
      _
    // Predicated region
    $region6: #{tpu_custom_call.1} parent=1 // pred_check
      _
    $region7: #{tpu_custom_call.1} parent=1 // pred_check_branch
      %18 = sbr.rel (0) target = $region9
    $region8: #{tpu_custom_call.1} parent=1 // pred_region
      _
    $region9: #{tpu_custom_call.1} parent=1 // pred_fallthru
      _
    // Predicated region
    $region10: #{tpu_custom_call.1} parent=1 // pred_check
      _
    $region11: #{tpu_custom_call.1} parent=1 // pred_check_branch
      %20 = sbr.rel (0) target = $region13
    $region12: #{tpu_custom_call.1} parent=1 // pred_region
      _
    $region13: #{tpu_custom_call.1} parent=1 // pred_fallthru
      _
    // Predicated region
    $region14: #{tpu_custom_call.1} parent=1 // pred_check
      _
    $region15: #{tpu_custom_call.1} parent=1 // pred_check_branch
      %22 = sbr.rel (0) target = $region17
    $region16: #{tpu_custom_call.1} parent=1 // pred_region
      _
    $region17: #{tpu_custom_call.1} parent=1 // pred_fallthru
      _
    // Predicated region
    $region18: #{tpu_custom_call.1} parent=1 // pred_check
      _
    $region19: #{tpu_custom_call.1} parent=1 // pred_check_branch
      %24 = sbr.rel (0) target = $region21
    $region20: #{tpu_custom_call.1} parent=1 // pred_region
      _
    $region21: #{tpu_custom_call.1} parent=1 // pred_fallthru
      _
    %v25 = vld [vmem:[%s0] sm:$0xff]
    %v26 = vld [vmem:[%s1] sm:$0xff]
    %v27 = vld [vmem:[%s1 + $0x8] sm:$0xff]
    %v28 = vld [vmem:[%s1 + $0x10] sm:$0xff]
    %v29 = vld [vmem:[%s1 + $0x18] sm:$0xff]
    %v30 = vld [vmem:[%s2] sm:$0x1]
    %v32 = vlaneseq
    %v33 = vshrl.u32 %v32, 7
    %v34 = vsub.s32 0, %v33
    %v35 = vrot.slane %v30, %v34
    %vm37 = vcmask 261120
    %v39 = vsel %vm37, %v25, 0
    %41 = vmatprep.subr.mxu0 0.0
    %42 = vmatpush1.msra.mxu0 %v26
    %43 = vmatprep.subr.mxu0 0.0
    %44 = vmatpush1.msra.mxu0 %v27
    %45 = vmatprep.subr.mxu0 0.0
    %46 = vmatpush1.msra.mxu0 %v28
    %47 = vmatprep.subr.mxu0 0.0
    %48 = vmatpush1.msra.mxu0 %v29
    %49 = vmatprep.subr.mxu0 0.0
    %50 = vmatpush1.msra.mxu0 0.0
    %51 = vmatprep.subr.mxu0 0.0
    %52 = vmatpush1.msra.mxu0 0.0
    %53 = vmatprep.subr.mxu0 0.0
    %54 = vmatpush1.msra.mxu0 0.0
    %55 = vmatprep.subr.mxu0 0.0
    %56 = vmatpush1.msra.mxu0 0.0
    %57 = vmatprep.subr.mxu0 0.0
    %58 = vmatpush1.msra.mxu0 0.0
    %59 = vmatprep.subr.mxu0 0.0
    %60 = vmatpush1.msra.mxu0 0.0
    %61 = vmatprep.subr.mxu0 0.0
    %62 = vmatpush1.msra.mxu0 0.0
    %63 = vmatprep.subr.mxu0 0.0
    %64 = vmatpush1.msra.mxu0 0.0
    %65 = vmatprep.subr.mxu0 0.0
    %66 = vmatpush1.msra.mxu0 0.0
    %67 = vmatprep.subr.mxu0 0.0
    %68 = vmatpush1.msra.mxu0 0.0
    %69 = vmatprep.subr.mxu0 0.0
    %70 = vmatpush1.msra.mxu0 0.0
    %71 = vmatprep.subr.mxu0 0.0
    %72 = vmatpush1.msra.mxu0 0.0
    %73 = vmatprep.subr.mxu0 0.0
    %74 = vmatpush1.msra.mxu0 0.0
    %75 = vmatprep.subr.mxu0 0.0
    %76 = vmatpush1.msra.mxu0 0.0
    %77 = vmatprep.subr.mxu0 0.0
    %78 = vmatpush1.msra.mxu0 0.0
    %79 = vmatprep.subr.mxu0 0.0
    %80 = vmatpush1.msra.mxu0 0.0
    %81 = vmatprep.subr.mxu0 0.0
    %82 = vmatpush1.msra.mxu0 0.0
    %83 = vmatprep.subr.mxu0 0.0
    %84 = vmatpush1.msra.mxu0 0.0
    %85 = vmatprep.subr.mxu0 0.0
    %86 = vmatpush1.msra.mxu0 0.0
    %87 = vmatprep.subr.mxu0 0.0
    %88 = vmatpush1.msra.mxu0 0.0
    %89 = vmatprep.subr.mxu0 0.0
    %90 = vmatpush1.msra.mxu0 0.0
    %91 = vmatprep.subr.mxu0 0.0
    %92 = vmatpush1.msra.mxu0 0.0
    %93 = vmatprep.subr.mxu0 0.0
    %94 = vmatpush1.msra.mxu0 0.0
    %95 = vmatprep.subr.mxu0 0.0
    %96 = vmatpush1.msra.mxu0 0.0
    %97 = vmatprep.subr.mxu0 0.0
    %98 = vmatpush1.msra.mxu0 0.0
    %99 = vmatprep.subr.mxu0 0.0
    %100 = vmatpush1.msra.mxu0 0.0
    %101 = vmatprep.subr.mxu0 0.0
    %102 = vmatpush1.msra.mxu0 0.0
    %103 = vmatprep.subr.mxu0 0.0
    %104 = vmatpush1.msra.mxu0 0.0
    %105 = vmatprep.mubr.f32.mxu0 0.0
    %106 = vmatmul.mubr.f32.gmra.mrb[0].mxu0 %v39
    %v107 = vpop.f32.mrb[0].mxu0
    %v108 = vadd.f32 %v35, %v107
    %v109 = vpop.f32.mrb[0].mxu0
    %110 = vdwg.mxu0
    %111 = vmax.xlane.f32.xlu0 %v108
    %v112 = vpop.xlane.xlu0 %111
    %v113 = vlaneseq
    %v114 = vand.u32 %v113, 127
    %vm115 = vcmp.eq.f32.partialorder %v108, %v112
    %v116 = vsel %vm115, %v114, 128
    %v117 = vand.u32 %v116, 65535
    %v118 = vshra.s32 %v116, 16
    %v119 = vcvt.s32.f32 %v117
    %v120 = vcvt.s32.f32 %v118
    %121 = vmin.xlane.f32.xlu0 %v120
    %v122 = vpop.xlane.xlu0 %121
    %vm123 = vcmp.eq.f32.partialorder %v120, %v122
    %v124 = vsel %vm123, %v119, inf
    %125 = vmin.xlane.f32.xlu0 %v124
    %v126 = vpop.xlane.xlu0 %125
    %v127 = vcvt.f32.s32 %v126
    %v128 = vcvt.f32.s32 %v122
    %v129 = vshll.u32 %v128, 16
    %v130 = vadd.s32 %v129, %v127
    %vm131 = vcmp.eq.s32.totalorder %v114, %v130
    %v132 = vsel %vm131, 1, 0
    %v133 = vcvt.s32.f32 %v132
    %v134 = vld [vmem:[%s3] sm:$0xff]
    %v135 = vld [vmem:[%s3 + $0x8] sm:$0xff]
    %v136 = vld [vmem:[%s3 + $0x10] sm:$0xff]
    %v137 = vld [vmem:[%s3 + $0x18] sm:$0xff]
    %v138 = vld [vmem:[%s3 + $0x20] sm:$0xff]
    %v139 = vld [vmem:[%s3 + $0x28] sm:$0xff]
    %v140 = vld [vmem:[%s3 + $0x30] sm:$0xff]
    %v141 = vld [vmem:[%s3 + $0x38] sm:$0xff]
    %v142 = vld [vmem:[%s3 + $0x40] sm:$0xff]
    %v143 = vld [vmem:[%s3 + $0x48] sm:$0xff]
    %v144 = vld [vmem:[%s3 + $0x50] sm:$0xff]
    %v145 = vld [vmem:[%s3 + $0x58] sm:$0xff]
    %v146 = vld [vmem:[%s3 + $0x60] sm:$0xff]
    %v147 = vld [vmem:[%s3 + $0x68] sm:$0xff]
    %v148 = vld [vmem:[%s3 + $0x70] sm:$0xff]
    %v149 = vld [vmem:[%s3 + $0x78] sm:$0xff]
    %v150 = vld [vmem:[%s4] sm:$0x1]
    %v152 = vlaneseq
    %v153 = vshrl.u32 %v152, 7
    %v154 = vsub.s32 0, %v153
    %v155 = vrot.slane %v150, %v154
    %157 = vmatprep.subr.mxu0 0.0
    %158 = vmatpush1.msra.mxu0 %v134
    %159 = vmatprep.subr.mxu0 0.0
    %160 = vmatpush1.msra.mxu0 %v135
    %161 = vmatprep.subr.mxu0 0.0
    %162 = vmatpush1.msra.mxu0 %v136
    %163 = vmatprep.subr.mxu0 0.0
    %164 = vmatpush1.msra.mxu0 %v137
    %165 = vmatprep.subr.mxu0 0.0
    %166 = vmatpush1.msra.mxu0 %v138
    %167 = vmatprep.subr.mxu0 0.0
    %168 = vmatpush1.msra.mxu0 %v139
    %169 = vmatprep.subr.mxu0 0.0
    %170 = vmatpush1.msra.mxu0 %v140
    %171 = vmatprep.subr.mxu0 0.0
    %172 = vmatpush1.msra.mxu0 %v141
    %173 = vmatprep.subr.mxu0 0.0
    %174 = vmatpush1.msra.mxu0 %v142
    %175 = vmatprep.subr.mxu0 0.0
    %176 = vmatpush1.msra.mxu0 %v143
    %177 = vmatprep.subr.mxu0 0.0
    %178 = vmatpush1.msra.mxu0 %v144
    %179 = vmatprep.subr.mxu0 0.0
    %180 = vmatpush1.msra.mxu0 %v145
    %181 = vmatprep.subr.mxu0 0.0
    %182 = vmatpush1.msra.mxu0 %v146
    %183 = vmatprep.subr.mxu0 0.0
    %184 = vmatpush1.msra.mxu0 %v147
    %185 = vmatprep.subr.mxu0 0.0
    %186 = vmatpush1.msra.mxu0 %v148
    %187 = vmatprep.subr.mxu0 0.0
    %188 = vmatpush1.msra.mxu0 %v149
    %189 = vmatprep.subr.mxu0 0.0
    %190 = vmatpush1.msra.mxu0 0.0
    %191 = vmatprep.subr.mxu0 0.0
    %192 = vmatpush1.msra.mxu0 0.0
    %193 = vmatprep.subr.mxu0 0.0
    %194 = vmatpush1.msra.mxu0 0.0
    %195 = vmatprep.subr.mxu0 0.0
    %196 = vmatpush1.msra.mxu0 0.0
    %197 = vmatprep.subr.mxu0 0.0
    %198 = vmatpush1.msra.mxu0 0.0
    %199 = vmatprep.subr.mxu0 0.0
    %200 = vmatpush1.msra.mxu0 0.0
    %201 = vmatprep.subr.mxu0 0.0
    %202 = vmatpush1.msra.mxu0 0.0
    %203 = vmatprep.subr.mxu0 0.0
    %204 = vmatpush1.msra.mxu0 0.0
    %205 = vmatprep.subr.mxu0 0.0
    %206 = vmatpush1.msra.mxu0 0.0
    %207 = vmatprep.subr.mxu0 0.0
    %208 = vmatpush1.msra.mxu0 0.0
    %209 = vmatprep.subr.mxu0 0.0
    %210 = vmatpush1.msra.mxu0 0.0
    %211 = vmatprep.subr.mxu0 0.0
    %212 = vmatpush1.msra.mxu0 0.0
    %213 = vmatprep.subr.mxu0 0.0
    %214 = vmatpush1.msra.mxu0 0.0
    %215 = vmatprep.subr.mxu0 0.0
    %216 = vmatpush1.msra.mxu0 0.0
    %217 = vmatprep.subr.mxu0 0.0
    %218 = vmatpush1.msra.mxu0 0.0
    %219 = vmatprep.subr.mxu0 0.0
    %220 = vmatpush1.msra.mxu0 0.0
    %221 = vmatprep.mubr.f32.mxu0 0.0
    %222 = vmatmul.mubr.f32.gmra.mrb[0].mxu0 %v133
    %v223 = vpop.f32.mrb[0].mxu0
    %v224 = vadd.f32 %v155, %v223
    %v225 = vpop.f32.mrb[0].mxu0
    %226 = vdwg.mxu0
    %227 = vst.msk [vmem:[#allocation2] sm:$0xff] %vm37, %v224
    %v228 = vpack.c.bf16 %v133, %v133
    %229 = vst [vmem:[#allocation4] sm:$0xf] %v228
    %v230 = vsub.f32 %v108, %v112
    %v231 = vmul.f32 %v230, 1.442695
    %v232 = vpow.pop %v231
    %233 = vadd.xlane.f32.xlu0 %v232
    %v234 = vpop.xlane.xlu0 %233
    %v235 = vrcp.pop %v234
    %v236 = vmul.f32 %v232, %v235
    %237 = vst [vmem:[#allocation6] sm:$0xff] %v236
    // Predicated region
    $region22: #{tpu_custom_call.1} parent=1 // pred_check
      _
    $region23: #{tpu_custom_call.1} parent=1 // pred_check_branch
      %239 = sbr.rel (0) target = $region25
    $region24: #{tpu_custom_call.1} parent=1 // pred_region
      %s241 = ssub.s32 128, 128
      %242 = vsyncadd [#allocation3], %s241
      %s244 = sshll.u32 [#allocation2], 4
      %s245 = int_to_ptr.vmem [resolvable:$true] %s244
      %247 = dma.vmem_to_hbm [thread:$0]  %s245, 128, %s5, [#allocation3]
    $region25: #{tpu_custom_call.1} parent=1 // pred_fallthru
      _
    // Predicated region
    $region26: #{tpu_custom_call.1} parent=1 // pred_check
      _
    $region27: #{tpu_custom_call.1} parent=1 // pred_check_branch
      %249 = sbr.rel (0) target = $region29
    $region28: #{tpu_custom_call.1} parent=1 // pred_region
      %s251 = ssub.s32 64, 64
      %252 = vsyncadd [#allocation5], %s251
      %s254 = sshll.u32 [#allocation4], 4
      %s255 = int_to_ptr.vmem [resolvable:$true] %s254
      %257 = dma.vmem_to_hbm [thread:$0]  %s255, 64, %s6, [#allocation5]
    $region29: #{tpu_custom_call.1} parent=1 // pred_fallthru
      _
    // Predicated region
    $region30: #{tpu_custom_call.1} parent=1 // pred_check
      _
    $region31: #{tpu_custom_call.1} parent=1 // pred_check_branch
      %259 = sbr.rel (0) target = $region33
    $region32: #{tpu_custom_call.1} parent=1 // pred_region
      %s261 = ssub.s32 128, 128
      %262 = vsyncadd [#allocation5], %s261
      %s264 = sshll.u32 [#allocation6], 4
      %s265 = int_to_ptr.vmem [resolvable:$true] %s264
      %267 = dma.vmem_to_hbm [thread:$0]  %s265, 128, %s7, [#allocation5]
    $region33: #{tpu_custom_call.1} parent=1 // pred_fallthru
      _
    // Predicated region
    $region34: #{tpu_custom_call.1} parent=1 // pred_check
      _
    $region35: #{tpu_custom_call.1} parent=1 // pred_check_branch
      %269 = sbr.rel (0) target = $region37
    $region36: #{tpu_custom_call.1} parent=1 // pred_region
      %270 = dma.done [#allocation3], 128
    $region37: #{tpu_custom_call.1} parent=1 // pred_fallthru
      _
    // Predicated region
    $region38: #{tpu_custom_call.1} parent=1 // pred_check
      _
    $region39: #{tpu_custom_call.1} parent=1 // pred_check_branch
      %272 = sbr.rel (0) target = $region41
    $region40: #{tpu_custom_call.1} parent=1 // pred_region
      %273 = dma.done [#allocation5], 64
    $region41: #{tpu_custom_call.1} parent=1 // pred_fallthru
      _
    // Predicated region
    $region42: #{tpu_custom_call.1} parent=1 // pred_check
      _
    $region43: #{tpu_custom_call.1} parent=1 // pred_check_branch
      %275 = sbr.rel (0) target = $region45
    $region44: #{tpu_custom_call.1} parent=1 // pred_region
      %276 = dma.done [#allocation5], 128
    $region45: #{tpu_custom_call.1} parent=1 // pred_fallthru
      _
    %277 = vsyncpa [#allocation3], 1
    %278 = vsyncpa [#allocation5], 1

</llo_original>
